<compile_context>
chip_gen: v6e
topology: v6e:2x2x1
jax: 0.10.0
libtpu: 0.0.40
codegen_flags: <defaults>
</compile_context>

<pallas_src>
import functools
import numpy as np
import jax
import jax.numpy as jnp
from jax.experimental import pallas as pl
from jax.experimental.pallas import tpu as pltpu


def _round_up(x, m):
    return ((x + m - 1) // m) * m


def _cb_loss_kernel(logits_ref, target_ref, w_ref, out_ref, *, batch_size, mask_rows):
    logits = logits_ref[...].astype(jnp.float32)     # (TB, C); cast rides VPU slack
    tgt = target_ref[...]                            # (TB, 1) int32
    w = w_ref[...]                                   # (TB, 1) f32  (= class_weight[target])

    TB, C = logits.shape
    col = jax.lax.broadcasted_iota(jnp.int32, (TB, C), 1)
    hit = col == tgt                                 # boolean one-hot, never materialized

    # Numerically-stable cross entropy: CE = logsumexp(logits) - logit[target]
    m = jnp.max(logits, axis=-1, keepdims=True)                        # (TB, 1)
    zs = logits - m
    lse = jnp.log(jnp.sum(jnp.exp(zs), axis=-1, keepdims=True))        # (TB, 1)
    picked = jnp.sum(jnp.where(hit, zs, 0.0), axis=-1, keepdims=True)  # z[target] - m
    ce = lse - picked                                                  # (TB, 1)

    contrib = w * ce
    if mask_rows:
        # Tail tile: rows >= batch_size are out-of-bounds reads (garbage); zero them
        # with a select so a NaN/inf from garbage logits cannot reach the partial sum.
        row = (jax.lax.broadcasted_iota(jnp.int32, (TB, 1), 0)
               + pl.program_id(0) * TB)
        contrib = jnp.where(row < batch_size, contrib, 0.0)

    tile_sum = jnp.sum(contrib)                      # f32 partial sum for this batch tile
    out_ref[...] = jnp.broadcast_to(tile_sum, out_ref.shape)   # lane-dense (8, 128) store


def class_balanced_loss(logits, target, class_weight, *, batch_tile=1024):
    """logits: (B, C) float (f32/bf16), target: (B,) int, class_weight: (C,) float."""
    B, C = logits.shape
    itemsize = jnp.dtype(logits.dtype).itemsize
    sub = max(8, 32 // itemsize)             # sublane multiple: f32 -> 8, bf16 -> 16
    lanes_c = _round_up(C, 128)              # VMEM lane footprint of the class axis

    # ---- generation-aware tile sizing --------------------------------------
    try:
        vmem_cap = int(pltpu.get_tpu_info().vmem_capacity_bytes)
    except Exception:
        vmem_cap = 64 * 1024 * 1024
    # Budget the f32 working tile (TB x lanes_c x 4B); total footprint is roughly
    # 2 x native logits tile (double buffer) + ~4 f32-sized compiler temps.
    tile_f32_budget = (4 if vmem_cap <= 64 * 1024 * 1024 else 12) * 1024 * 1024
    max_tb = max(sub, (tile_f32_budget // (lanes_c * 4)) // sub * sub)

    if B <= sub:
        TB = B if B < sub else sub           # full-extent (or single-sublane-group) block
    else:
        TB = min(_round_up(batch_tile, sub), max_tb)
        TB = min(TB, _round_up(-(-B // 2), sub))   # >= 2 grid steps for v7x's 2 TCs
        TB = min(TB, _round_up(B, sub))
        TB = max(TB, sub)
    num_tiles = -(-B // TB)                  # ceil-div
    # TODO(synk): for very large C (>~16K classes) add a second 'arbitrary' class-tile
    # grid axis with an online logsumexp instead of one full-C block per row tile.

    # ---- wrapper-side per-sample weight gather (B elements, not B*C) --------
    tgt_i32 = target.astype(jnp.int32)
    w_sample = class_weight.astype(jnp.float32)[tgt_i32].reshape(B, 1)
    target_2d = tgt_i32.reshape(B, 1)

    kernel = functools.partial(_cb_loss_kernel, batch_size=B,
                               mask_rows=(B % TB) != 0)

    # Temp-aware VMEM footprint estimate -> explicit limit on every generation.
    tile_native = TB * lanes_c * itemsize
    tile_f32 = TB * lanes_c * 4
    est_bytes = (2 * tile_native            # double-buffered logits blocks
                 + 4 * tile_f32             # f32 cast + zs/exp/hit compiler temps
                 + 4 * (TB * 128 * 4)       # target + weight blocks (lane-padded), x2 bufs
                 + 2 * 8 * 128 * 4)         # output blocks
    vmem_limit = int(min(max(2 * est_bytes, 16 * 1024 * 1024), (vmem_cap * 3) // 4))

    partials = pl.pallas_call(
        kernel,
        out_shape=jax.ShapeDtypeStruct((num_tiles * 8, 128), jnp.float32),
        grid=(num_tiles,),
        in_specs=[
            pl.BlockSpec((TB, C), lambda i: (i, 0)),   # logits, native dtype, no padding
            pl.BlockSpec((TB, 1), lambda i: (i, 0)),   # targets
            pl.BlockSpec((TB, 1), lambda i: (i, 0)),   # class_weight[target]
        ],
        out_specs=pl.BlockSpec((8, 128), lambda i: (i, 0)),
        compiler_params=pltpu.CompilerParams(
            dimension_semantics=("parallel",),         # batch tiles are independent
            vmem_limit_bytes=vmem_limit,
        ),
    )(logits, target_2d, w_sample)

    # Tiny final reduction + exact 1/B mean in plain JAX (f32 accumulation throughout).
    return jnp.sum(partials[::8, 0]) * (1.0 / B)


def make_class_weights(samples_per_cls, beta=0.9999):
    """Deterministic weight construction, mirroring ClassBalancedLoss.__init__."""
    samples_per_cls = np.asarray(samples_per_cls, dtype=np.float64)
    effective_num = 1.0 - np.power(beta, samples_per_cls)
    weights = (1.0 - beta) / effective_num
    weights = weights / np.sum(weights) * len(samples_per_cls)
    return jnp.asarray(weights, dtype=jnp.float32)


def _reference(logits, target, class_weight):
    logits = logits.astype(jnp.float32)
    log_probs = jax.nn.log_softmax(logits, axis=-1)
    ce = -jnp.take_along_axis(log_probs, target[:, None].astype(jnp.int32), axis=-1)[:, 0]
    return jnp.mean(class_weight[target] * ce)


if __name__ == "__main__":
    key = jax.random.PRNGKey(0)
    k1, k2, k3, k4 = jax.random.split(key, 4)

    # --- test 1: original small shape (B=8, C=4), f32, single tile ---
    B, C = 8, 4
    w = make_class_weights([100, 200, 300, 400], beta=0.9999)
    logits = jax.random.normal(k1, (B, C), dtype=jnp.float32)
    target = jax.random.randint(k2, (B,), 0, C, dtype=jnp.int32)
    loss = class_balanced_loss(logits, target, w)
    jax.block_until_ready(loss)
    ref = _reference(logits, target, w)
    assert jnp.allclose(loss, ref, atol=1e-5, rtol=1e-4), (loss, ref)

    # --- test 2: non-aligned shape + multi-tile grid (tail-row mask, no padding) ---
    B2, C2 = 300, 10
    w2 = make_class_weights(list(range(50, 50 + 10 * C2, 10)), beta=0.999)
    logits2 = jax.random.normal(k3, (B2, C2), dtype=jnp.float32)
    target2 = jax.random.randint(k4, (B2,), 0, C2, dtype=jnp.int32)
    loss2 = class_balanced_loss(logits2, target2, w2, batch_tile=128)  # forces 3 tiles
    jax.block_until_ready(loss2)
    ref2 = _reference(logits2, target2, w2)
    assert jnp.allclose(loss2, ref2, atol=1e-5, rtol=1e-4), (loss2, ref2)

    # --- test 3: bf16 logits stay bf16 in HBM, cast to f32 in-kernel ---
    logits_bf16 = logits2.astype(jnp.bfloat16)
    loss3 = class_balanced_loss(logits_bf16, target2, w2)
    jax.block_until_ready(loss3)
    ref3 = _reference(logits_bf16, target2, w2)
    assert jnp.allclose(loss3, ref3, atol=1e-3, rtol=1e-3), (loss3, ref3)

    print("KERNEL_OK")
</pallas_src>

<mosaic_0001>
module attributes {stable_mosaic.version = 11 : i64} {
  func.func @_cb_loss_kernel(%arg0: i32, %arg1: memref<8x4xf32, #tpu.memory_space<vmem>>, %arg2: memref<8x1xi32, #tpu.memory_space<vmem>>, %arg3: memref<8x1xf32, #tpu.memory_space<vmem>>, %arg4: memref<8x128xf32, #tpu.memory_space<vmem>>) attributes {dimension_semantics = [#tpu.dimension_semantics<parallel>], iteration_bounds = array<i64: 1>, scalar_prefetch = 0 : i64, scratch_operands = 0 : i64, tpu.core_type = #tpu.core_type<tc>, window_params = [{transform_indices = @transform_0, window_bounds = array<i64: 8, 4>}, {transform_indices = @transform_1, window_bounds = array<i64: 8, 1>}, {transform_indices = @transform_2, window_bounds = array<i64: 8, 1>}, {transform_indices = @transform_3, window_bounds = array<i64: 8, 128>}]} {
    %c0 = arith.constant 0 : index
    %c0_0 = arith.constant 0 : index
    %0 = vector.load %arg1[%c0, %c0_0] : memref<8x4xf32, #tpu.memory_space<vmem>>, vector<8x4xf32>
    %c0_1 = arith.constant 0 : index
    %c0_2 = arith.constant 0 : index
    %1 = vector.load %arg2[%c0_1, %c0_2] : memref<8x1xi32, #tpu.memory_space<vmem>>, vector<8x1xi32>
    %c0_3 = arith.constant 0 : index
    %c0_4 = arith.constant 0 : index
    %2 = vector.load %arg3[%c0_3, %c0_4] : memref<8x1xf32, #tpu.memory_space<vmem>>, vector<8x1xf32>
    %3 = tpu.iota {dimensions = array<i32: 1>} : vector<8x4xi32>
    %4 = vector.broadcast %1 : vector<8x1xi32> to vector<8x4xi32>
    %5 = arith.cmpi eq, %3, %4 : vector<8x4xi32>
    %cst = arith.constant dense<0xFF800000> : vector<8xf32>
    %6 = vector.multi_reduction <maximumf>, %0, %cst [1] : vector<8x4xf32> to vector<8xf32>
    %7 = vector.shape_cast %6 : vector<8xf32> to vector<8x1xf32>
    %8 = vector.broadcast %7 : vector<8x1xf32> to vector<8x4xf32>
    %9 = arith.subf %0, %8 : vector<8x4xf32>
    %10 = math.exp %9 : vector<8x4xf32>
    %cst_5 = arith.constant dense<0.000000e+00> : vector<8xf32>
    %11 = vector.multi_reduction <add>, %10, %cst_5 [1] : vector<8x4xf32> to vector<8xf32>
    %12 = vector.shape_cast %11 : vector<8xf32> to vector<8x1xf32>
    %13 = math.log %12 : vector<8x1xf32>
    %cst_6 = arith.constant 0.000000e+00 : f32
    %14 = vector.broadcast %cst_6 : f32 to vector<8x4xf32>
    %15 = arith.select %5, %9, %14 : vector<8x4xi1>, vector<8x4xf32>
    %cst_7 = arith.constant dense<0.000000e+00> : vector<8xf32>
    %16 = vector.multi_reduction <add>, %15, %cst_7 [1] : vector<8x4xf32> to vector<8xf32>
    %17 = vector.shape_cast %16 : vector<8xf32> to vector<8x1xf32>
    %18 = arith.subf %13, %17 : vector<8x1xf32>
    %19 = arith.mulf %2, %18 : vector<8x1xf32>
    %20 = vector.shape_cast %19 : vector<8x1xf32> to vector<1x8x1xf32>
    %cst_8 = arith.constant dense<0.000000e+00> : vector<1xf32>
    %21 = vector.multi_reduction <add>, %20, %cst_8 [1, 2] : vector<1x8x1xf32> to vector<1xf32>
    %22 = vector.shape_cast %21 : vector<1xf32> to vector<1x1x1xf32>
    %23 = vector.extract %22[0, 0, 0] : f32 from vector<1x1x1xf32>
    %24 = vector.broadcast %23 : f32 to vector<8x128xf32>
    %c0_9 = arith.constant 0 : index
    %c0_10 = arith.constant 0 : index
    %25 = vector.load %arg4[%c0_9, %c0_10] : memref<8x128xf32, #tpu.memory_space<vmem>>, vector<8x128xf32>
    tpu.vector_store %arg4[%c0_9, %c0_10], %24 {strides = array<i32>} : memref<8x128xf32, #tpu.memory_space<vmem>>, vector<8x128xf32>,
    return
  }
  func.func @transform_0(%arg0: i32) -> (i32, i32) {
    %c0_i32 = arith.constant 0 : i32
    %c0_i32_0 = arith.constant 0 : i32
    return %arg0, %c0_i32 : i32, i32
  }
  func.func @transform_1(%arg0: i32) -> (i32, i32) {
    %c0_i32 = arith.constant 0 : i32
    %c0_i32_0 = arith.constant 0 : i32
    return %arg0, %c0_i32 : i32, i32
  }
  func.func @transform_2(%arg0: i32) -> (i32, i32) {
    %c0_i32 = arith.constant 0 : i32
    %c0_i32_0 = arith.constant 0 : i32
    return %arg0, %c0_i32 : i32, i32
  }
  func.func @transform_3(%arg0: i32) -> (i32, i32) {
    %c0_i32 = arith.constant 0 : i32
    %c0_i32_0 = arith.constant 0 : i32
    return %arg0, %c0_i32 : i32, i32
  }
}

</mosaic_0001>

<llo_original>
// kernel: tpu_custom_call.1
$region0: #{tpu_custom_call.1}
  #allocation0 [shape = 'u32[]', space=smem, size = 0x4, offset = 0x4, fixed_abs, tag = 'smem constant byte address 0x4 - core index']
  #allocation1 [shape = 'u32[144,128]{1,0:T(1,128)}', space=vmem, size = 0x12000, scoped, tag = 'internal scratch']
  %s0 = inlined_call_operand.vmem [shape: f32[8,4], index: 0, kind: input, shape index: {}]
  %s1 = inlined_call_operand.vmem [shape: s32[8,1], index: 1, kind: input, shape index: {}]
  %s2 = inlined_call_operand.vmem [shape: f32[8,1], index: 2, kind: input, shape index: {}]
  %s3 = inlined_call_operand.hbm [shape: f32[8,128], index: 3, kind: output, shape index: {}]
  %s4 = sld [smem:[#allocation0]]
  $region22: #{tpu_custom_call.1} parent=0
    _
  %s6 = ssub.s32 1, %s4
  %s7 = scalar_select 0, %s6, %s4
  $region1: #{tpu_custom_call.1} parent=0
    #allocation2 [shape = 'u8[4096]{0}', space=vmem, size = 0x1000, scoped, tag = 'output window, operand 0, single buffered']
    #allocation3 [shape = 's32[1]{0}', space=sflag, size = 0x4, scoped, tag = 'scoped memory for tpu_custom_call.1']
    %8 = vsyncpa [#allocation3], 0
    // Predicated region
    $region2: #{tpu_custom_call.1} parent=1 // pred_check
      _
    $region3: #{tpu_custom_call.1} parent=1 // pred_check_branch
      %10 = sbr.rel (0) target = $region5
    $region4: #{tpu_custom_call.1} parent=1 // pred_region
      _
    $region5: #{tpu_custom_call.1} parent=1 // pred_fallthru
      _
    // Predicated region
    $region6: #{tpu_custom_call.1} parent=1 // pred_check
      _
    $region7: #{tpu_custom_call.1} parent=1 // pred_check_branch
      %12 = sbr.rel (0) target = $region9
    $region8: #{tpu_custom_call.1} parent=1 // pred_region
      _
    $region9: #{tpu_custom_call.1} parent=1 // pred_fallthru
      _
    // Predicated region
    $region10: #{tpu_custom_call.1} parent=1 // pred_check
      _
    $region11: #{tpu_custom_call.1} parent=1 // pred_check_branch
      %14 = sbr.rel (0) target = $region13
    $region12: #{tpu_custom_call.1} parent=1 // pred_region
      _
    $region13: #{tpu_custom_call.1} parent=1 // pred_fallthru
      _
    %v15 = vld [vmem:[%s0] sm:$0xff]
    %v16 = vld [vmem:[%s1] sm:$0xff]
    %v17 = vld [vmem:[%s2] sm:$0xff]
    %v18 = vlaneseq
    %v19 = vand.u32 %v18, 127
    %20 = vset.pattern.permute.xlu0 0
    %21 = vperm.xlu0 %20, %v16
    %v22 = vpop.permute.xlu0 %21
    %vm23 = vcmp.eq.s32.totalorder %v19, %v22
    %vm24 = vcmask 31744
    %v25 = vsel %vm24, %v15, -inf
    %26 = vmax.xlane.f32.xlu0 %v25
    %v27 = vpop.xlane.xlu0 %26
    %v28 = vsub.f32 %v15, %v27
    %v29 = vmul.f32 %v28, 1.442695
    %v30 = vpow.pop %v29
    %v31 = vsel %vm24, %v30, 0.0
    %32 = vadd.xlane.f32.xlu0 %v31
    %v33 = vpop.xlane.xlu0 %32
    %v34 = vlog2.pop %v33
    %v35 = vmul.f32 %v34, 0.6931472
    %v36 = vsel %vm23, %v28, 0.0
    %v37 = vsel %vm24, %v36, 0.0
    %38 = vadd.xlane.f32.xlu0 %v37
    %v39 = vpop.xlane.xlu0 %38
    %v40 = vsub.f32 %v35, %v39
    %v41 = vmul.f32 %v17, %v40
    %vm42 = vcmask 7168
    %v43 = vsel %vm42, %v41, 0.0
    %44 = vadd.xlane.f32.xlu0 %v43
    %v45 = vpop.xlane.xlu0 %44
    %v46 = vrot.slane %v45, 4
    %v47 = vadd.f32 %v45, %v46
    %v48 = vrot.slane %v47, 2
    %v49 = vadd.f32 %v47, %v48
    %v50 = vrot.slane %v49, 1
    %v51 = vadd.f32 %v49, %v50
    %s52 = vtos %v51
    %v53 = vstv %s52
    %54 = vst [vmem:[#allocation2] sm:$0xff] %v53
    // Predicated region
    $region14: #{tpu_custom_call.1} parent=1 // pred_check
      _
    $region15: #{tpu_custom_call.1} parent=1 // pred_check_branch
      %56 = sbr.rel (0) target = $region17
    $region16: #{tpu_custom_call.1} parent=1 // pred_region
      %s58 = ssub.s32 128, 128
      %59 = vsyncadd [#allocation3], %s58
      %s61 = sshll.u32 [#allocation2], 4
      %s62 = int_to_ptr.vmem [resolvable:$true] %s61
      %64 = dma.vmem_to_hbm [thread:$0]  %s62, 128, %s3, [#allocation3]
    $region17: #{tpu_custom_call.1} parent=1 // pred_fallthru
      _
    // Predicated region
    $region18: #{tpu_custom_call.1} parent=1 // pred_check
      _
    $region19: #{tpu_custom_call.1} parent=1 // pred_check_branch
      %66 = sbr.rel (0) target = $region21
    $region20: #{tpu_custom_call.1} parent=1 // pred_region
      %67 = dma.done [#allocation3], 128
    $region21: #{tpu_custom_call.1} parent=1 // pred_fallthru
      _
    %68 = vsyncpa [#allocation3], 1

</llo_original>
